<compile_context>
chip_gen: v7x
topology: tpu7x:2x2x1
jax: 0.10.0
libtpu: 0.0.40
codegen_flags: <defaults>
</compile_context>

<pallas_src>
import functools

import jax
import jax.numpy as jnp
from jax.experimental import pallas as pl
from jax.experimental.pallas import tpu as pltpu


# ----------------------------------------------------------------------------
# Pallas kernel: whole coupling-layer hot path on one transposed batch tile.
# All tensors are (features, batch_tile): features on sublanes, batch on lanes.
# ----------------------------------------------------------------------------
def masked_coupling_kernel(xT_ref, maskT_ref,
                           w1_ref, b1_ref, w2_ref, b2_ref, w3_ref, b3_ref,
                           yT_ref, dlp_ref, *, h1, h2, d):
    xT = xT_ref[...]                       # (d, TB)  f32
    maskT = maskT_ref[...]                 # (d, 1)   broadcasts over batch lanes
    one_minus_mask = 1.0 - maskT

    xm = xT * maskT                        # masked conditioner input

    # ---- fused conditioner nets: 3 matmuls instead of 6 ----
    # layer 1: (2*h1, d) @ (d, TB); rows [:h1] -> tanh (scale net),
    #                               rows [h1:] -> relu (shift net)
    pre1 = jnp.dot(w1_ref[...], xm, preferred_element_type=jnp.float32) + b1_ref[...]
    a1 = jnp.concatenate([jnp.tanh(pre1[:h1]),
                          jnp.maximum(pre1[h1:], 0.0)], axis=0)

    # layer 2: block-diagonal (2*h2, 2*h1) keeps the two nets independent
    pre2 = jnp.dot(w2_ref[...], a1, preferred_element_type=jnp.float32) + b2_ref[...]
    a2 = jnp.concatenate([jnp.tanh(pre2[:h2]),
                          jnp.maximum(pre2[h2:], 0.0)], axis=0)

    # layer 3: block-diagonal (2*d, 2*h2); rows [:d] = scale logits, [d:] = shift
    pre3 = jnp.dot(w3_ref[...], a2, preferred_element_type=jnp.float32) + b3_ref[...]
    s_out = pre3[:d]                       # (d, TB)  pre-exp scale logits
    shift = pre3[d:]                       # (d, TB)

    masked_scale = jnp.exp(s_out) * one_minus_mask + maskT
    masked_shift = shift * one_minus_mask

    # logdetjac = sum(log(masked_scale)) == sum over unmasked features of s_out
    logdetjac = jnp.sum(s_out * one_minus_mask, axis=0, keepdims=True)   # (1, TB)

    yT_ref[...] = xT * masked_scale + masked_shift
    dlp_ref[...] = -logdetjac              # delta_logp for the forward direction


# ----------------------------------------------------------------------------
# Weight packing: transpose to (out, in), fuse the two nets
# (concat layer 1, block-diagonal layers 2 and 3). Done once per call.
# ----------------------------------------------------------------------------
def _pack_params(scale_params, shift_params):
    (ws1, bs1), (ws2, bs2), (ws3, bs3) = scale_params
    (wt1, bt1), (wt2, bt2), (wt3, bt3) = shift_params
    d, h1 = ws1.shape
    h2 = ws2.shape[1]

    w1 = jnp.concatenate([ws1.T, wt1.T], axis=0)                     # (2*h1, d)
    b1 = jnp.concatenate([bs1.T, bt1.T], axis=0)                     # (2*h1, 1)

    w2 = jnp.zeros((2 * h2, 2 * h1), jnp.float32)
    w2 = w2.at[:h2, :h1].set(ws2.T).at[h2:, h1:].set(wt2.T)          # block diag
    b2 = jnp.concatenate([bs2.T, bt2.T], axis=0)                     # (2*h2, 1)

    w3 = jnp.zeros((2 * d, 2 * h2), jnp.float32)
    w3 = w3.at[:d, :h2].set(ws3.T).at[d:, h2:].set(wt3.T)            # block diag
    b3 = jnp.concatenate([bs3.T, bt3.T], axis=0)                     # (2*d, 1)

    return (w1, b1, w2, b2, w3, b3), (d, h1, h2)


# ----------------------------------------------------------------------------
# Wrapper: lane-dense transposed layout, batch tiled on the lane axis,
# batch zero-padded to a multiple of the tile so any N is supported.
# ----------------------------------------------------------------------------
@functools.partial(jax.jit, static_argnames=("tb",))
def masked_coupling_forward(x, mask, scale_params, shift_params, *, tb=512):
    n, d = x.shape
    (w1, b1, w2, b2, w3, b3), (d_p, h1, h2) = _pack_params(scale_params, shift_params)
    assert d_p == d

    n_pad = pl.cdiv(n, tb) * tb
    xT = jnp.zeros((d, n_pad), jnp.float32).at[:, :n].set(x.T)
    maskT = mask.reshape(1, d).T.astype(jnp.float32)                 # (d, 1)

    rep = lambda shape: pl.BlockSpec(shape, lambda i: (0, 0))
    grid_spec = pltpu.PrefetchScalarGridSpec(
        num_scalar_prefetch=0,
        grid=(n_pad // tb,),
        in_specs=[
            pl.BlockSpec((d, tb), lambda i: (0, i)),     # x^T batch tile (lane-dense)
            rep((d, 1)),                                 # mask^T
            rep((2 * h1, d)), rep((2 * h1, 1)),          # fused layer 1
            rep((2 * h2, 2 * h1)), rep((2 * h2, 1)),     # fused layer 2 (block-diag)
            rep((2 * d, 2 * h2)), rep((2 * d, 1)),       # fused layer 3 (block-diag)
        ],
        out_specs=[
            pl.BlockSpec((d, tb), lambda i: (0, i)),     # y^T
            pl.BlockSpec((1, tb), lambda i: (0, i)),     # delta_logp^T
        ],
    )

    kernel = functools.partial(masked_coupling_kernel, h1=h1, h2=h2, d=d)
    yT, dlpT = pl.pallas_call(
        kernel,
        out_shape=(
            jax.ShapeDtypeStruct((d, n_pad), jnp.float32),
            jax.ShapeDtypeStruct((1, n_pad), jnp.float32),
        ),
        grid_spec=grid_spec,
        compiler_params=pltpu.CompilerParams(
            dimension_semantics=("parallel",)),
    )(xT, maskT, w1, b1, w2, b2, w3, b3)

    y = yT[:, :n].T                       # (n, d)
    delta_logp = dlpT[:, :n].T            # (n, 1)
    return y, delta_logp


# ----------------------------------------------------------------------------
# Parameter / mask construction (deterministic, in-script)
# ----------------------------------------------------------------------------
def sample_mask(d, mask_type="alternate", swap=False):
    mask = jnp.zeros((d,), jnp.float32)
    if mask_type == "alternate":
        mask = mask.at[::2].set(1.0)
    elif mask_type == "channel":
        mask = mask.at[: d // 2].set(1.0)
    else:
        raise ValueError(f"Unknown mask_type {mask_type}")
    if swap:
        mask = 1.0 - mask
    return mask.reshape(1, d)


def build_net_params(key, input_dim, hidden_dims):
    """Linear layers input_dim -> hidden_dims... -> input_dim, weights (in,out)."""
    dims = (input_dim,) + tuple(hidden_dims) + (input_dim,)
    params = []
    for in_dim, out_dim in zip(dims[:-1], dims[1:]):
        key, kw, kb = jax.random.split(key, 3)
        bound = 1.0 / jnp.sqrt(in_dim)          # same scheme as nn.Linear default
        w = jax.random.uniform(kw, (in_dim, out_dim), jnp.float32, -bound, bound)
        b = jax.random.uniform(kb, (1, out_dim), jnp.float32, -bound, bound)
        params.append((w, b))
    return params, key


def reference_forward(x, mask, scale_params, shift_params):
    """Pure-JAX reference mirroring the PyTorch module (reverse=False)."""
    xm = x * mask
    h = xm
    for i, (w, b) in enumerate(scale_params):
        h = h @ w + b
        if i < len(scale_params) - 1:
            h = jnp.tanh(h)
    scale = jnp.exp(h)
    h = xm
    for i, (w, b) in enumerate(shift_params):
        h = h @ w + b
        if i < len(shift_params) - 1:
            h = jnp.maximum(h, 0.0)
    shift = h
    masked_scale = scale * (1.0 - mask) + mask
    masked_shift = shift * (1.0 - mask)
    logdetjac = jnp.sum(jnp.log(masked_scale), axis=1, keepdims=True)
    y = x * masked_scale + masked_shift
    return y, -logdetjac


if __name__ == "__main__":
    d = 8
    hidden_dims = (32, 32)
    n = 256        # batch
    tb = 128       # batch tile on the lane axis -> grid of 2 parallel steps (v7x)

    key = jax.random.PRNGKey(0)
    key, kx = jax.random.split(key)
    x = jax.random.normal(kx, (n, d), jnp.float32)

    mask = sample_mask(d, mask_type="alternate", swap=False)
    scale_params, key = build_net_params(key, d, hidden_dims)
    shift_params, key = build_net_params(key, d, hidden_dims)

    y, delta_logp = masked_coupling_forward(
        x, mask, scale_params, shift_params, tb=tb)
    jax.block_until_ready((y, delta_logp))

    y_ref, dlp_ref = reference_forward(x, mask, scale_params, shift_params)
    assert jnp.allclose(y, y_ref, atol=1e-4, rtol=1e-4), \
        float(jnp.max(jnp.abs(y - y_ref)))
    assert jnp.allclose(delta_logp, dlp_ref, atol=1e-4, rtol=1e-4), \
        float(jnp.max(jnp.abs(delta_logp - dlp_ref)))

    print("KERNEL_OK")
</pallas_src>

<mosaic_0001>
module attributes {stable_mosaic.version = 11 : i64} {
  func.func @masked_coupling_kernel(%arg0: i32, %arg1: memref<8x128xf32, #tpu.memory_space<vmem>>, %arg2: memref<8x1xf32, #tpu.memory_space<vmem>>, %arg3: memref<64x8xf32, #tpu.memory_space<vmem>>, %arg4: memref<64x1xf32, #tpu.memory_space<vmem>>, %arg5: memref<64x64xf32, #tpu.memory_space<vmem>>, %arg6: memref<64x1xf32, #tpu.memory_space<vmem>>, %arg7: memref<16x64xf32, #tpu.memory_space<vmem>>, %arg8: memref<16x1xf32, #tpu.memory_space<vmem>>, %arg9: memref<8x128xf32, #tpu.memory_space<vmem>>, %arg10: memref<1x128xf32, #tpu.memory_space<vmem>>) attributes {dimension_semantics = [#tpu.dimension_semantics<parallel>], iteration_bounds = array<i64: 2>, scalar_prefetch = 0 : i64, scratch_operands = 0 : i64, tpu.core_type = #tpu.core_type<tc>, window_params = [{transform_indices = @transform_0, window_bounds = array<i64: 8, 128>}, {pipeline_mode = #tpu.pipeline_mode<synchronous>, transform_indices = @transform_1, window_bounds = array<i64: 8, 1>}, {pipeline_mode = #tpu.pipeline_mode<synchronous>, transform_indices = @transform_2, window_bounds = array<i64: 64, 8>}, {pipeline_mode = #tpu.pipeline_mode<synchronous>, transform_indices = @transform_3, window_bounds = array<i64: 64, 1>}, {pipeline_mode = #tpu.pipeline_mode<synchronous>, transform_indices = @transform_4, window_bounds = array<i64: 64, 64>}, {pipeline_mode = #tpu.pipeline_mode<synchronous>, transform_indices = @transform_5, window_bounds = array<i64: 64, 1>}, {pipeline_mode = #tpu.pipeline_mode<synchronous>, transform_indices = @transform_6, window_bounds = array<i64: 16, 64>}, {pipeline_mode = #tpu.pipeline_mode<synchronous>, transform_indices = @transform_7, window_bounds = array<i64: 16, 1>}, {transform_indices = @transform_8, window_bounds = array<i64: 8, 128>}, {transform_indices = @transform_9, window_bounds = array<i64: 1, 128>}]} {
    %c0 = arith.constant 0 : index
    %c0_0 = arith.constant 0 : index
    %0 = vector.load %arg1[%c0, %c0_0] : memref<8x128xf32, #tpu.memory_space<vmem>>, vector<8x128xf32>
    %c0_1 = arith.constant 0 : index
    %c0_2 = arith.constant 0 : index
    %1 = vector.load %arg2[%c0_1, %c0_2] : memref<8x1xf32, #tpu.memory_space<vmem>>, vector<8x1xf32>
    %cst = arith.constant 1.000000e+00 : f32
    %2 = vector.broadcast %cst : f32 to vector<8x1xf32>
    %3 = arith.subf %2, %1 : vector<8x1xf32>
    %4 = vector.broadcast %1 : vector<8x1xf32> to vector<8x128xf32>
    %5 = arith.mulf %0, %4 : vector<8x128xf32>
    %c0_3 = arith.constant 0 : index
    %c0_4 = arith.constant 0 : index
    %6 = vector.load %arg3[%c0_3, %c0_4] : memref<64x8xf32, #tpu.memory_space<vmem>>, vector<64x8xf32>
    %cst_5 = arith.constant dense<0.000000e+00> : vector<64x128xf32>
    %7 = tpu.matmul %6, %5, %cst_5 {dimension_numbers = #tpu.dot_dimension_numbers<[1], [0], [0], [1], [0, 0, 1, 1], [], []>} : vector<64x8xf32>, vector<8x128xf32>, vector<64x128xf32> -> vector<64x128xf32>
    %c0_6 = arith.constant 0 : index
    %c0_7 = arith.constant 0 : index
    %8 = vector.load %arg4[%c0_6, %c0_7] : memref<64x1xf32, #tpu.memory_space<vmem>>, vector<64x1xf32>
    %9 = vector.broadcast %8 : vector<64x1xf32> to vector<64x128xf32>
    %10 = arith.addf %7, %9 : vector<64x128xf32>
    %11 = vector.extract_strided_slice %10 {offsets = [0, 0], sizes = [32, 128], strides = [1, 1]} : vector<64x128xf32> to vector<32x128xf32>
    %12 = math.tanh %11 : vector<32x128xf32>
    %13 = vector.extract_strided_slice %10 {offsets = [32, 0], sizes = [32, 128], strides = [1, 1]} : vector<64x128xf32> to vector<32x128xf32>
    %cst_8 = arith.constant 0.000000e+00 : f32
    %14 = vector.broadcast %cst_8 : f32 to vector<32x128xf32>
    %15 = arith.maximumf %13, %14 : vector<32x128xf32>
    %16 = tpu.concatenate %12, %15 in 0 : vector<32x128xf32>, vector<32x128xf32> -> vector<64x128xf32>
    %c0_9 = arith.constant 0 : index
    %c0_10 = arith.constant 0 : index
    %17 = vector.load %arg5[%c0_9, %c0_10] : memref<64x64xf32, #tpu.memory_space<vmem>>, vector<64x64xf32>
    %cst_11 = arith.constant dense<0.000000e+00> : vector<64x128xf32>
    %18 = tpu.matmul %17, %16, %cst_11 {dimension_numbers = #tpu.dot_dimension_numbers<[1], [0], [0], [1], [0, 0, 1, 1], [], []>} : vector<64x64xf32>, vector<64x128xf32>, vector<64x128xf32> -> vector<64x128xf32>
    %c0_12 = arith.constant 0 : index
    %c0_13 = arith.constant 0 : index
    %19 = vector.load %arg6[%c0_12, %c0_13] : memref<64x1xf32, #tpu.memory_space<vmem>>, vector<64x1xf32>
    %20 = vector.broadcast %19 : vector<64x1xf32> to vector<64x128xf32>
    %21 = arith.addf %18, %20 : vector<64x128xf32>
    %22 = vector.extract_strided_slice %21 {offsets = [0, 0], sizes = [32, 128], strides = [1, 1]} : vector<64x128xf32> to vector<32x128xf32>
    %23 = math.tanh %22 : vector<32x128xf32>
    %24 = vector.extract_strided_slice %21 {offsets = [32, 0], sizes = [32, 128], strides = [1, 1]} : vector<64x128xf32> to vector<32x128xf32>
    %cst_14 = arith.constant 0.000000e+00 : f32
    %25 = vector.broadcast %cst_14 : f32 to vector<32x128xf32>
    %26 = arith.maximumf %24, %25 : vector<32x128xf32>
    %27 = tpu.concatenate %23, %26 in 0 : vector<32x128xf32>, vector<32x128xf32> -> vector<64x128xf32>
    %c0_15 = arith.constant 0 : index
    %c0_16 = arith.constant 0 : index
    %28 = vector.load %arg7[%c0_15, %c0_16] : memref<16x64xf32, #tpu.memory_space<vmem>>, vector<16x64xf32>
    %cst_17 = arith.constant dense<0.000000e+00> : vector<16x128xf32>
    %29 = tpu.matmul %28, %27, %cst_17 {dimension_numbers = #tpu.dot_dimension_numbers<[1], [0], [0], [1], [0, 0, 1, 1], [], []>} : vector<16x64xf32>, vector<64x128xf32>, vector<16x128xf32> -> vector<16x128xf32>
    %c0_18 = arith.constant 0 : index
    %c0_19 = arith.constant 0 : index
    %30 = vector.load %arg8[%c0_18, %c0_19] : memref<16x1xf32, #tpu.memory_space<vmem>>, vector<16x1xf32>
    %31 = vector.broadcast %30 : vector<16x1xf32> to vector<16x128xf32>
    %32 = arith.addf %29, %31 : vector<16x128xf32>
    %33 = vector.extract_strided_slice %32 {offsets = [0, 0], sizes = [8, 128], strides = [1, 1]} : vector<16x128xf32> to vector<8x128xf32>
    %34 = vector.extract_strided_slice %32 {offsets = [8, 0], sizes = [8, 128], strides = [1, 1]} : vector<16x128xf32> to vector<8x128xf32>
    %35 = math.exp %33 : vector<8x128xf32>
    %36 = vector.broadcast %3 : vector<8x1xf32> to vector<8x128xf32>
    %37 = arith.mulf %35, %36 : vector<8x128xf32>
    %38 = vector.broadcast %1 : vector<8x1xf32> to vector<8x128xf32>
    %39 = arith.addf %37, %38 : vector<8x128xf32>
    %40 = vector.broadcast %3 : vector<8x1xf32> to vector<8x128xf32>
    %41 = arith.mulf %34, %40 : vector<8x128xf32>
    %42 = vector.broadcast %3 : vector<8x1xf32> to vector<8x128xf32>
    %43 = arith.mulf %33, %42 : vector<8x128xf32>
    %cst_20 = arith.constant dense<0.000000e+00> : vector<128xf32>
    %44 = vector.multi_reduction <add>, %43, %cst_20 [0] : vector<8x128xf32> to vector<128xf32>
    %45 = vector.shape_cast %44 : vector<128xf32> to vector<1x128xf32>
    %46 = arith.mulf %0, %39 : vector<8x128xf32>
    %47 = arith.addf %46, %41 : vector<8x128xf32>
    %c0_21 = arith.constant 0 : index
    %c0_22 = arith.constant 0 : index
    %48 = vector.load %arg9[%c0_21, %c0_22] : memref<8x128xf32, #tpu.memory_space<vmem>>, vector<8x128xf32>
    tpu.vector_store %arg9[%c0_21, %c0_22], %47 {strides = array<i32>} : memref<8x128xf32, #tpu.memory_space<vmem>>, vector<8x128xf32>,
    %cst_23 = arith.constant 0.000000e+00 : f32
    %49 = vector.broadcast %cst_23 : f32 to vector<1x128xf32>
    %50 = arith.subf %49, %45 : vector<1x128xf32>
    %c0_24 = arith.constant 0 : index
    %c0_25 = arith.constant 0 : index
    %51 = vector.load %arg10[%c0_24, %c0_25] : memref<1x128xf32, #tpu.memory_space<vmem>>, vector<1x128xf32>
    tpu.vector_store %arg10[%c0_24, %c0_25], %50 {strides = array<i32>} : memref<1x128xf32, #tpu.memory_space<vmem>>, vector<1x128xf32>,
    return
  }
  func.func @transform_0(%arg0: i32) -> (i32, i32) {
    %c0_i32 = arith.constant 0 : i32
    %c0_i32_0 = arith.constant 0 : i32
    return %c0_i32, %arg0 : i32, i32
  }
  func.func @transform_1(%arg0: i32) -> (i32, i32) {
    %c0_i32 = arith.constant 0 : i32
    %c0_i32_0 = arith.constant 0 : i32
    %c0_i32_1 = arith.constant 0 : i32
    return %c0_i32, %c0_i32_0 : i32, i32
  }
  func.func @transform_2(%arg0: i32) -> (i32, i32) {
    %c0_i32 = arith.constant 0 : i32
    %c0_i32_0 = arith.constant 0 : i32
    %c0_i32_1 = arith.constant 0 : i32
    return %c0_i32, %c0_i32_0 : i32, i32
  }
  func.func @transform_3(%arg0: i32) -> (i32, i32) {
    %c0_i32 = arith.constant 0 : i32
    %c0_i32_0 = arith.constant 0 : i32
    %c0_i32_1 = arith.constant 0 : i32
    return %c0_i32, %c0_i32_0 : i32, i32
  }
  func.func @transform_4(%arg0: i32) -> (i32, i32) {
    %c0_i32 = arith.constant 0 : i32
    %c0_i32_0 = arith.constant 0 : i32
    %c0_i32_1 = arith.constant 0 : i32
    return %c0_i32, %c0_i32_0 : i32, i32
  }
  func.func @transform_5(%arg0: i32) -> (i32, i32) {
    %c0_i32 = arith.constant 0 : i32
    %c0_i32_0 = arith.constant 0 : i32
    %c0_i32_1 = arith.constant 0 : i32
    return %c0_i32, %c0_i32_0 : i32, i32
  }
  func.func @transform_6(%arg0: i32) -> (i32, i32) {
    %c0_i32 = arith.constant 0 : i32
    %c0_i32_0 = arith.constant 0 : i32
    %c0_i32_1 = arith.constant 0 : i32
    return %c0_i32, %c0_i32_0 : i32, i32
  }
  func.func @transform_7(%arg0: i32) -> (i32, i32) {
    %c0_i32 = arith.constant 0 : i32
    %c0_i32_0 = arith.constant 0 : i32
    %c0_i32_1 = arith.constant 0 : i32
    return %c0_i32, %c0_i32_0 : i32, i32
  }
  func.func @transform_8(%arg0: i32) -> (i32, i32) {
    %c0_i32 = arith.constant 0 : i32
    %c0_i32_0 = arith.constant 0 : i32
    return %c0_i32, %arg0 : i32, i32
  }
  func.func @transform_9(%arg0: i32) -> (i32, i32) {
    %c0_i32 = arith.constant 0 : i32
    %c0_i32_0 = arith.constant 0 : i32
    return %c0_i32, %arg0 : i32, i32
  }
}

</mosaic_0001>

<llo_original>
// kernel: masked_coupling_forward.1
$region0: #{masked_coupling_forward.1}
  #allocation0 [shape = 'u32[]', space=smem, size = 0x4, offset = 0x4, fixed_abs, tag = 'smem constant byte address 0x4 - core index']
  #allocation1 [shape = 'u32[144,128]{1,0:T(1,128)}', space=vmem, size = 0x12000, scoped, tag = 'internal scratch']
  %s0 = inlined_call_operand.vmem [shape: f32[8,256], index: 0, kind: input, shape index: {}]
  %s1 = inlined_call_operand.vmem [shape: f32[8,1], index: 1, kind: input, shape index: {}]
  %s2 = inlined_call_operand.vmem [shape: f32[64,8], index: 2, kind: input, shape index: {}]
  %s3 = inlined_call_operand.vmem [shape: f32[64,1], index: 3, kind: input, shape index: {}]
  %s4 = inlined_call_operand.vmem [shape: f32[64,64], index: 4, kind: input, shape index: {}]
  %s5 = inlined_call_operand.vmem [shape: f32[64,1], index: 5, kind: input, shape index: {}]
  %s6 = inlined_call_operand.vmem [shape: f32[16,64], index: 6, kind: input, shape index: {}]
  %s7 = inlined_call_operand.vmem [shape: f32[16,1], index: 7, kind: input, shape index: {}]
  %s8 = inlined_call_operand.hbm [shape: f32[8,256], index: 8, kind: output, shape index: {0}]
  %s9 = inlined_call_operand.hbm [shape: f32[1,256], index: 9, kind: output, shape index: {1}]
  %10 = xla_tuple %s8, %s9
  %s11 = sld [smem:[#allocation0]]
  $region73: #{masked_coupling_forward.1} parent=0
    _
  %s13 = ssub.s32 1, %s11
  %s14 = scalar_select 0, %s13, %s11
  $region1: #{masked_coupling_forward.1} parent=0
    #allocation2 [shape = 'u8[8192]{0}', space=vmem, size = 0x2000, scoped, tag = 'output window, operand 0']
    #allocation3 [shape = 's32[2]{0}', space=sflag, size = 0x8, scoped, tag = 'scoped memory for masked_coupling_forward.1']
    #allocation4 [shape = 'u8[1024]{0}', space=vmem, size = 0x400, scoped, tag = 'output window, operand 1']
    #allocation5 [shape = 's32[2]{0}', space=sflag, size = 0x8, scoped, tag = 'scoped memory for masked_coupling_forward.1']
    %15 = vsyncpa [#allocation3], 0
    %s16 = scalar_lea.sflag [#allocation3], 1
    %17 = vsyncpa %s16, 0
    %18 = vsyncpa [#allocation5], 0
    %s19 = scalar_lea.sflag [#allocation5], 1
    %20 = vsyncpa %s19, 0
    loop: start=0, step=1, limit=4
    $region2: #{masked_coupling_forward.1} parent=1 // loop_pre_header
      _
    $region3: #{masked_coupling_forward.1} parent=1 // loop_header
      %s22 = sphi 0, %s26
      %p23 = scmp.ge.s32.totalorder %s22, 4
      %s32 = sphi 0, %s34
      %s35 = sphi 0, %s32
      %s36 = sphi 0, %s35
      %s52 = sphi 0, %s36
      %s56 = sphi 0, %s56
      %s58 = sphi 0, %s56
      %s59 = sphi 0, %s58
      %s73 = sphi 0, %s59
      %s77 = sphi 0, %s77
      %s79 = sphi 0, %s77
      %s80 = sphi 0, %s79
      %s94 = sphi 0, %s80
      %s98 = sphi 0, %s98
      %s100 = sphi 0, %s98
      %s101 = sphi 0, %s100
      %s115 = sphi 0, %s101
      %s119 = sphi 0, %s119
      %s121 = sphi 0, %s119
      %s122 = sphi 0, %s121
      %s136 = sphi 0, %s122
      %s140 = sphi 0, %s140
      %s142 = sphi 0, %s140
      %s143 = sphi 0, %s142
      %s157 = sphi 0, %s143
      %s161 = sphi 0, %s161
      %s163 = sphi 0, %s161
      %s164 = sphi 0, %s163
      %s178 = sphi 0, %s164
      %s182 = sphi 0, %s182
      %s184 = sphi 0, %s182
      %s185 = sphi 0, %s184
      %s199 = sphi 0, %s185
      %s205 = sphi 0, %s207
      %s208 = sphi 0, %s205
      %s209 = sphi 0, %s208
      %s225 = sphi 0, %s209
      %s231 = sphi 0, %s233
      %s234 = sphi 0, %s231
      %s235 = sphi 0, %s234
      %s251 = sphi 0, %s235
    $region4: #{masked_coupling_forward.1} parent=1 // loop_header_branch
      %25 = sbr.rel (%p23) target = $region8
    $region5: #{masked_coupling_forward.1} parent=1 // loop_body
      %s27 = ssub.s32 %s22, 1
      %s28 = ssub.s32 %s22, 2
      %s29 = sadd.s32 %s22, 1
      %s30 = ssub.s32 %s22, %s29
      %p31 = scmp.eq.s32.totalorder %s30, 0
      %s33 = sadd.s32 %s32, 1
      %s34 = scalar_select %p31, %s32, %s33
      %p37 = pneg %p31
      %p38 = scmp.eq.s32.totalorder %s22, 1
      %p39 = por %p37, %p38
      %p40 = scmp.ne.s32.totalorder %s32, %s35
      %p41 = scmp.eq.s32.totalorder %s22, 0
      %p42 = por %p40, %p41
      %p43 = scmp.ne.s32.totalorder %s32, %s35
      %p44 = scmp.eq.s32.totalorder %s27, 1
      %p45 = por %p43, %p44
      %p46 = scmp.ne.s32.totalorder %s35, %s36
      %p47 = scmp.eq.s32.totalorder %s27, 0
      %p48 = por %p46, %p47
      %p49 = scmp.ne.s32.totalorder %s35, %s36
      %p50 = scmp.eq.s32.totalorder %s28, 1
      %p51 = por %p49, %p50
      %p53 = scmp.ne.s32.totalorder %s36, %s52
      %p54 = scmp.eq.s32.totalorder %s28, 0
      %p55 = por %p53, %p54
      %s57 = sadd.s32 %s56, 1
      %p60 = scmp.eq.s32.totalorder %s22, 1
      %p61 = scmp.ne.s32.totalorder %s56, %s58
      %p62 = scmp.eq.s32.totalorder %s22, 0
      %p63 = por %p61, %p62
      %p64 = scmp.ne.s32.totalorder %s56, %s58
      %p65 = scmp.eq.s32.totalorder %s27, 1
      %p66 = por %p64, %p65
      %p67 = scmp.ne.s32.totalorder %s58, %s59
      %p68 = scmp.eq.s32.totalorder %s27, 0
      %p69 = por %p67, %p68
      %p70 = scmp.ne.s32.totalorder %s58, %s59
      %p71 = scmp.eq.s32.totalorder %s28, 1
      %p72 = por %p70, %p71
      %p74 = scmp.ne.s32.totalorder %s59, %s73
      %p75 = scmp.eq.s32.totalorder %s28, 0
      %p76 = por %p74, %p75
      %s78 = sadd.s32 %s77, 1
      %p81 = scmp.eq.s32.totalorder %s22, 1
      %p82 = scmp.ne.s32.totalorder %s77, %s79
      %p83 = scmp.eq.s32.totalorder %s22, 0
      %p84 = por %p82, %p83
      %p85 = scmp.ne.s32.totalorder %s77, %s79
      %p86 = scmp.eq.s32.totalorder %s27, 1
      %p87 = por %p85, %p86
      %p88 = scmp.ne.s32.totalorder %s79, %s80
      %p89 = scmp.eq.s32.totalorder %s27, 0
      %p90 = por %p88, %p89
      %p91 = scmp.ne.s32.totalorder %s79, %s80
      %p92 = scmp.eq.s32.totalorder %s28, 1
      %p93 = por %p91, %p92
      %p95 = scmp.ne.s32.totalorder %s80, %s94
      %p96 = scmp.eq.s32.totalorder %s28, 0
      %p97 = por %p95, %p96
      %s99 = sadd.s32 %s98, 1
      %p102 = scmp.eq.s32.totalorder %s22, 1
      %p103 = scmp.ne.s32.totalorder %s98, %s100
      %p104 = scmp.eq.s32.totalorder %s22, 0
      %p105 = por %p103, %p104
      %p106 = scmp.ne.s32.totalorder %s98, %s100
      %p107 = scmp.eq.s32.totalorder %s27, 1
      %p108 = por %p106, %p107
      %p109 = scmp.ne.s32.totalorder %s100, %s101
      %p110 = scmp.eq.s32.totalorder %s27, 0
      %p111 = por %p109, %p110
      %p112 = scmp.ne.s32.totalorder %s100, %s101
      %p113 = scmp.eq.s32.totalorder %s28, 1
      %p114 = por %p112, %p113
      %p116 = scmp.ne.s32.totalorder %s101, %s115
      %p117 = scmp.eq.s32.totalorder %s28, 0
      %p118 = por %p116, %p117
      %s120 = sadd.s32 %s119, 1
      %p123 = scmp.eq.s32.totalorder %s22, 1
      %p124 = scmp.ne.s32.totalorder %s119, %s121
      %p125 = scmp.eq.s32.totalorder %s22, 0
      %p126 = por %p124, %p125
      %p127 = scmp.ne.s32.totalorder %s119, %s121
      %p128 = scmp.eq.s32.totalorder %s27, 1
      %p129 = por %p127, %p128
      %p130 = scmp.ne.s32.totalorder %s121, %s122
      %p131 = scmp.eq.s32.totalorder %s27, 0
      %p132 = por %p130, %p131
      %p133 = scmp.ne.s32.totalorder %s121, %s122
      %p134 = scmp.eq.s32.totalorder %s28, 1
      %p135 = por %p133, %p134
      %p137 = scmp.ne.s32.totalorder %s122, %s136
      %p138 = scmp.eq.s32.totalorder %s28, 0
      %p139 = por %p137, %p138
      %s141 = sadd.s32 %s140, 1
      %p144 = scmp.eq.s32.totalorder %s22, 1
      %p145 = scmp.ne.s32.totalorder %s140, %s142
      %p146 = scmp.eq.s32.totalorder %s22, 0
      %p147 = por %p145, %p146
      %p148 = scmp.ne.s32.totalorder %s140, %s142
      %p149 = scmp.eq.s32.totalorder %s27, 1
      %p150 = por %p148, %p149
      %p151 = scmp.ne.s32.totalorder %s142, %s143
      %p152 = scmp.eq.s32.totalorder %s27, 0
      %p153 = por %p151, %p152
      %p154 = scmp.ne.s32.totalorder %s142, %s143
      %p155 = scmp.eq.s32.totalorder %s28, 1
      %p156 = por %p154, %p155
      %p158 = scmp.ne.s32.totalorder %s143, %s157
      %p159 = scmp.eq.s32.totalorder %s28, 0
      %p160 = por %p158, %p159
      %s162 = sadd.s32 %s161, 1
      %p165 = scmp.eq.s32.totalorder %s22, 1
      %p166 = scmp.ne.s32.totalorder %s161, %s163
      %p167 = scmp.eq.s32.totalorder %s22, 0
      %p168 = por %p166, %p167
      %p169 = scmp.ne.s32.totalorder %s161, %s163
      %p170 = scmp.eq.s32.totalorder %s27, 1
      %p171 = por %p169, %p170
      %p172 = scmp.ne.s32.totalorder %s163, %s164
      %p173 = scmp.eq.s32.totalorder %s27, 0
      %p174 = por %p172, %p173
      %p175 = scmp.ne.s32.totalorder %s163, %s164
      %p176 = scmp.eq.s32.totalorder %s28, 1
      %p177 = por %p175, %p176
      %p179 = scmp.ne.s32.totalorder %s164, %s178
      %p180 = scmp.eq.s32.totalorder %s28, 0
      %p181 = por %p179, %p180
      %s183 = sadd.s32 %s182, 1
      %p186 = scmp.eq.s32.totalorder %s22, 1
      %p187 = scmp.ne.s32.totalorder %s182, %s184
      %p188 = scmp.eq.s32.totalorder %s22, 0
      %p189 = por %p187, %p188
      %p190 = scmp.ne.s32.totalorder %s182, %s184
      %p191 = scmp.eq.s32.totalorder %s27, 1
      %p192 = por %p190, %p191
      %p193 = scmp.ne.s32.totalorder %s184, %s185
      %p194 = scmp.eq.s32.totalorder %s27, 0
      %p195 = por %p193, %p194
      %p196 = scmp.ne.s32.totalorder %s184, %s185
      %p197 = scmp.eq.s32.totalorder %s28, 1
      %p198 = por %p196, %p197
      %p200 = scmp.ne.s32.totalorder %s185, %s199
      %p201 = scmp.eq.s32.totalorder %s28, 0
      %p202 = por %p200, %p201
      %s203 = ssub.s32 %s22, %s29
      %p204 = scmp.eq.s32.totalorder %s203, 0
      %s206 = sadd.s32 %s205, 1
      %s207 = scalar_select %p204, %s205, %s206
      %p210 = pneg %p204
      %p211 = scmp.eq.s32.totalorder %s22, 1
      %p212 = por %p210, %p211
      %p213 = scmp.ne.s32.totalorder %s205, %s208
      %p214 = scmp.eq.s32.totalorder %s22, 0
      %p215 = por %p213, %p214
      %p216 = scmp.ne.s32.totalorder %s205, %s208
      %p217 = scmp.eq.s32.totalorder %s27, 1
      %p218 = por %p216, %p217
      %p219 = scmp.ne.s32.totalorder %s208, %s209
      %p220 = scmp.eq.s32.totalorder %s27, 0
      %p221 = por %p219, %p220
      %p222 = scmp.ne.s32.totalorder %s208, %s209
      %p223 = scmp.eq.s32.totalorder %s28, 1
      %p224 = por %p222, %p223
      %p226 = scmp.ne.s32.totalorder %s209, %s225
      %p227 = scmp.eq.s32.totalorder %s28, 0
      %p228 = por %p226, %p227
      %s229 = ssub.s32 %s22, %s29
      %p230 = scmp.eq.s32.totalorder %s229, 0
      %s232 = sadd.s32 %s231, 1
      %s233 = scalar_select %p230, %s231, %s232
      %p236 = pneg %p230
      %p237 = scmp.eq.s32.totalorder %s22, 1
      %p238 = por %p236, %p237
      %p239 = scmp.ne.s32.totalorder %s231, %s234
      %p240 = scmp.eq.s32.totalorder %s22, 0
      %p241 = por %p239, %p240
      %p242 = scmp.ne.s32.totalorder %s231, %s234
      %p243 = scmp.eq.s32.totalorder %s27, 1
      %p244 = por %p242, %p243
      %p245 = scmp.ne.s32.totalorder %s234, %s235
      %p246 = scmp.eq.s32.totalorder %s27, 0
      %p247 = por %p245, %p246
      %p248 = scmp.ne.s32.totalorder %s234, %s235
      %p249 = scmp.eq.s32.totalorder %s28, 1
      %p250 = por %p248, %p249
      %p252 = scmp.ne.s32.totalorder %s235, %s251
      %p253 = scmp.eq.s32.totalorder %s28, 0
      %p254 = por %p252, %p253
      %p255 = scmp.le.s32.totalorder 1, %s22
      %p256 = scmp.lt.s32.totalorder %s22, 3
      %p257 = pnand %p255, %p256
      %p258 = pneg %p257
      // Predicated region
      $region9: #{masked_coupling_forward.1} parent=5 // pred_check
        _
      $region10: #{masked_coupling_forward.1} parent=5 // pred_check_branch
        %260 = sbr.rel (%p257) target = $region12
      $region11: #{masked_coupling_forward.1} parent=5 // pred_region
        %s261 = ssub.s32 %s22, 1
        // Predicated region
        $region13: #{masked_coupling_forward.1} parent=11 // pred_check
          %p262 = pneg %p69
        $region14: #{masked_coupling_forward.1} parent=11 // pred_check_branch
          %264 = sbr.rel (%p262) target = $region16
        $region15: #{masked_coupling_forward.1} parent=11 // pred_region
          _
        $region16: #{masked_coupling_forward.1} parent=11 // pred_fallthru
          _
        // Predicated region
        $region17: #{masked_coupling_forward.1} parent=11 // pred_check
          %p265 = pneg %p90
        $region18: #{masked_coupling_forward.1} parent=11 // pred_check_branch
          %267 = sbr.rel (%p265) target = $region20
        $region19: #{masked_coupling_forward.1} parent=11 // pred_region
          _
        $region20: #{masked_coupling_forward.1} parent=11 // pred_fallthru
          _
        // Predicated region
        $region21: #{masked_coupling_forward.1} parent=11 // pred_check
          %p268 = pneg %p111
        $region22: #{masked_coupling_forward.1} parent=11 // pred_check_branch
          %270 = sbr.rel (%p268) target = $region24
        $region23: #{masked_coupling_forward.1} parent=11 // pred_region
          _
        $region24: #{masked_coupling_forward.1} parent=11 // pred_fallthru
          _
        // Predicated region
        $region25: #{masked_coupling_forward.1} parent=11 // pred_check
          %p271 = pneg %p132
        $region26: #{masked_coupling_forward.1} parent=11 // pred_check_branch
          %273 = sbr.rel (%p271) target = $region28
        $region27: #{masked_coupling_forward.1} parent=11 // pred_region
          _
        $region28: #{masked_coupling_forward.1} parent=11 // pred_fallthru
          _
        // Predicated region
        $region29: #{masked_coupling_forward.1} parent=11 // pred_check
          %p274 = pneg %p153
        $region30: #{masked_coupling_forward.1} parent=11 // pred_check_branch
          %276 = sbr.rel (%p274) target = $region32
        $region31: #{masked_coupling_forward.1} parent=11 // pred_region
          _
        $region32: #{masked_coupling_forward.1} parent=11 // pred_fallthru
          _
        // Predicated region
        $region33: #{masked_coupling_forward.1} parent=11 // pred_check
          %p277 = pneg %p174
        $region34: #{masked_coupling_forward.1} parent=11 // pred_check_branch
          %279 = sbr.rel (%p277) target = $region36
        $region35: #{masked_coupling_forward.1} parent=11 // pred_region
          _
        $region36: #{masked_coupling_forward.1} parent=11 // pred_fallthru
          _
        // Predicated region
        $region37: #{masked_coupling_forward.1} parent=11 // pred_check
          %p280 = pneg %p195
        $region38: #{masked_coupling_forward.1} parent=11 // pred_check_branch
          %282 = sbr.rel (%p280) target = $region40
        $region39: #{masked_coupling_forward.1} parent=11 // pred_region
          _
        $region40: #{masked_coupling_forward.1} parent=11 // pred_fallthru
          _
      $region12: #{masked_coupling_forward.1} parent=5 // pred_fallthru
        _
      %p283 = scmp.lt.s32.totalorder %s22, 2
      // Predicated region
      $region41: #{masked_coupling_forward.1} parent=5 // pred_check
        %p284 = pneg %p283
      $region42: #{masked_coupling_forward.1} parent=5 // pred_check_branch
        %286 = sbr.rel (%p284) target = $region44
      $region43: #{masked_coupling_forward.1} parent=5 // pred_region
        // Predicated region
        $region45: #{masked_coupling_forward.1} parent=43 // pred_check
          %p287 = pneg %p42
        $region46: #{masked_coupling_forward.1} parent=43 // pred_check_branch
          %289 = sbr.rel (%p287) target = $region48
        $region47: #{masked_coupling_forward.1} parent=43 // pred_region
          %p290 = scmp.lt.s32.totalorder %s22, 1
          %s291 = scalar_select %p290, %s22, 1
          %s292 = smul.addr %s291, 8
          %s293 = scalar_lea.vmem %s0, %s292
        $region48: #{masked_coupling_forward.1} parent=43 // pred_fallthru
          _
      $region44: #{masked_coupling_forward.1} parent=5 // pred_fallthru
        _
      %p294 = scmp.le.s32.totalorder 1, %s22
      %p295 = scmp.lt.s32.totalorder %s22, 3
      %p296 = pnand %p294, %p295
      %p297 = pneg %p296
      // Predicated region
      $region49: #{masked_coupling_forward.1} parent=5 // pred_check
        _
      $region50: #{masked_coupling_forward.1} parent=5 // pred_check_branch
        %299 = sbr.rel (%p296) target = $region52
      $region51: #{masked_coupling_forward.1} parent=5 // pred_region
        %s300 = ssub.s32 %s22, 1
        %p301 = scmp.lt.s32.totalorder %s27, 1
        %s302 = scalar_select %p301, %s27, 1
        %s303 = smul.addr %s302, 8
        %s304 = scalar_lea.vmem %s0, %s303
        %p305 = pneg %p48
        %p306 = pneg %p45
        %p307 = pneg %p69
        %p308 = pneg %p66
        %p309 = pneg %p90
        %p310 = pneg %p87
        %p311 = pneg %p111
        %p312 = pneg %p108
        %p313 = pneg %p132
        %p314 = pneg %p129
        %p315 = pneg %p153
        %p316 = pneg %p150
        %p317 = pneg %p174
        %p318 = pneg %p171
        %p319 = pneg %p195
        %p320 = pneg %p192
        %p321 = pneg %p221
        %p322 = pneg %p218
        %s323 = sand.u32 %s208, 1
        %s324 = scalar_lea.sflag [#allocation3], %s323
        %s325 = sand.u32 %s208, 1
        %s326 = smul.addr %s325, 8
        %s327 = scalar_lea.vmem [#allocation2], %s326
        %p328 = pneg %p247
        %p329 = pneg %p244
        %s330 = sand.u32 %s234, 1
        %s331 = scalar_lea.sflag [#allocation5], %s330
        %s332 = sand.u32 %s234, 1
        %s333 = scalar_lea.vmem [#allocation4], %s332
        %p334 = scmp.lt.s32.totalorder %s27, 1
        %s335 = scalar_select %p334, %s27, 1
        %s336 = smul.addr %s335, 8
        %s337 = scalar_lea.vmem %s0, %s336
        %v338 = vld [vmem:[%s337] sm:$0xff]
        %v339 = vld [vmem:[%s1] sm:$0xff]
        %v340 = vsub.f32 1.0, %v339
        %342 = vset.pattern.permute.xlu0 0
        %343 = vperm.xlu0 %342, %v339
        %v344 = vpop.permute.xlu0 %343
        %v346 = vmul.f32 %v338, %v344
        %v347 = vld [vmem:[%s2] sm:$0xff]
        %v348 = vld [vmem:[%s2 + $0x8] sm:$0xff]
        %v349 = vld [vmem:[%s2 + $0x10] sm:$0xff]
        %v350 = vld [vmem:[%s2 + $0x18] sm:$0xff]
        %v351 = vld [vmem:[%s2 + $0x20] sm:$0xff]
        %v352 = vld [vmem:[%s2 + $0x28] sm:$0xff]
        %v353 = vld [vmem:[%s2 + $0x30] sm:$0xff]
        %v354 = vld [vmem:[%s2 + $0x38] sm:$0xff]
        %v355 = vld [vmem:[%s3] sm:$0xff]
        %v356 = vld [vmem:[%s3 + $0x8] sm:$0xff]
        %v357 = vld [vmem:[%s3 + $0x10] sm:$0xff]
        %v358 = vld [vmem:[%s3 + $0x18] sm:$0xff]
        %v359 = vld [vmem:[%s3 + $0x20] sm:$0xff]
        %v360 = vld [vmem:[%s3 + $0x28] sm:$0xff]
        %v361 = vld [vmem:[%s3 + $0x30] sm:$0xff]
        %v362 = vld [vmem:[%s3 + $0x38] sm:$0xff]
        %364 = vset.pattern.permute.xlu0 0
        %365 = vperm.xlu0 %364, %v355
        %v366 = vpop.permute.xlu0 %365
        %369 = vset.pattern.permute.xlu0 0
        %370 = vperm.xlu0 %369, %v356
        %v371 = vpop.permute.xlu0 %370
        %374 = vset.pattern.permute.xlu0 0
        %375 = vperm.xlu0 %374, %v357
        %v376 = vpop.permute.xlu0 %375
        %379 = vset.pattern.permute.xlu0 0
        %380 = vperm.xlu0 %379, %v358
        %v381 = vpop.permute.xlu0 %380
        %384 = vset.pattern.permute.xlu0 0
        %385 = vperm.xlu0 %384, %v359
        %v386 = vpop.permute.xlu0 %385
        %389 = vset.pattern.permute.xlu0 0
        %390 = vperm.xlu0 %389, %v360
        %v391 = vpop.permute.xlu0 %390
        %394 = vset.pattern.permute.xlu0 0
        %395 = vperm.xlu0 %394, %v361
        %v396 = vpop.permute.xlu0 %395
        %399 = vset.pattern.permute.xlu0 0
        %400 = vperm.xlu0 %399, %v362
        %v401 = vpop.permute.xlu0 %400
        %vm403 = vcmask 64512
        %v405 = vsel %vm403, %v347, 0
        %v408 = vsel %vm403, %v348, 0
        %v411 = vsel %vm403, %v349, 0
        %v414 = vsel %vm403, %v350, 0
        %v417 = vsel %vm403, %v351, 0
        %v420 = vsel %vm403, %v352, 0
        %v423 = vsel %vm403, %v353, 0
        %v426 = vsel %vm403, %v354, 0
        %428 = vmatprep.subr.mxu0 0.0
        %429 = vmatpush1.msra.mxu0 %v346
        %430 = vmatprep.subr.mxu0 0.0
        %431 = vmatpush1.msra.mxu0 0.0
        %432 = vmatprep.subr.mxu0 0.0
        %433 = vmatpush1.msra.mxu0 0.0
        %434 = vmatprep.subr.mxu0 0.0
        %435 = vmatpush1.msra.mxu0 0.0
        %436 = vmatprep.subr.mxu0 0.0
        %437 = vmatpush1.msra.mxu0 0.0
        %438 = vmatprep.subr.mxu0 0.0
        %439 = vmatpush1.msra.mxu0 0.0
        %440 = vmatprep.subr.mxu0 0.0
        %441 = vmatpush1.msra.mxu0 0.0
        %442 = vmatprep.subr.mxu0 0.0
        %443 = vmatpush1.msra.mxu0 0.0
        %444 = vmatprep.subr.mxu0 0.0
        %445 = vmatpush1.msra.mxu0 0.0
        %446 = vmatprep.subr.mxu0 0.0
        %447 = vmatpush1.msra.mxu0 0.0
        %448 = vmatprep.subr.mxu0 0.0
        %449 = vmatpush1.msra.mxu0 0.0
        %450 = vmatprep.subr.mxu0 0.0
        %451 = vmatpush1.msra.mxu0 0.0
        %452 = vmatprep.subr.mxu0 0.0
        %453 = vmatpush1.msra.mxu0 0.0
        %454 = vmatprep.subr.mxu0 0.0
        %455 = vmatpush1.msra.mxu0 0.0
        %456 = vmatprep.subr.mxu0 0.0
        %457 = vmatpush1.msra.mxu0 0.0
        %458 = vmatprep.subr.mxu0 0.0
        %459 = vmatpush1.msra.mxu0 0.0
        %460 = vmatprep.subr.mxu0 0.0
        %461 = vmatpush1.msra.mxu0 0.0
        %462 = vmatprep.subr.mxu0 0.0
        %463 = vmatpush1.msra.mxu0 0.0
        %464 = vmatprep.subr.mxu0 0.0
        %465 = vmatpush1.msra.mxu0 0.0
        %466 = vmatprep.subr.mxu0 0.0
        %467 = vmatpush1.msra.mxu0 0.0
        %468 = vmatprep.subr.mxu0 0.0
        %469 = vmatpush1.msra.mxu0 0.0
        %470 = vmatprep.subr.mxu0 0.0
        %471 = vmatpush1.msra.mxu0 0.0
        %472 = vmatprep.subr.mxu0 0.0
        %473 = vmatpush1.msra.mxu0 0.0
        %474 = vmatprep.subr.mxu0 0.0
        %475 = vmatpush1.msra.mxu0 0.0
        %476 = vmatprep.subr.mxu0 0.0
        %477 = vmatpush1.msra.mxu0 0.0
        %478 = vmatprep.subr.mxu0 0.0
        %479 = vmatpush1.msra.mxu0 0.0
        %480 = vmatprep.subr.mxu0 0.0
        %481 = vmatpush1.msra.mxu0 0.0
        %482 = vmatprep.subr.mxu0 0.0
        %483 = vmatpush1.msra.mxu0 0.0
        %484 = vmatprep.subr.mxu0 0.0
        %485 = vmatpush1.msra.mxu0 0.0
        %486 = vmatprep.subr.mxu0 0.0
        %487 = vmatpush1.msra.mxu0 0.0
        %488 = vmatprep.subr.mxu0 0.0
        %489 = vmatpush1.msra.mxu0 0.0
        %490 = vmatprep.subr.mxu0 0.0
        %491 = vmatpush1.msra.mxu0 0.0
        %492 = vmatprep.mubr.f32.mxu0 0.0
        %493 = vmatmul.mubr.f32.gmra.mrb[0].mxu0 %v405
        %v494 = vpop.f32.mrb[0].mxu0
        %v495 = vadd.f32 %v366, %v494
        %v496 = vpop.f32.mrb[0].mxu0
        %497 = vmatprep.mubr.f32.mxu0 0.0
        %498 = vmatmul.mubr.f32.gmra.mrb[0].mxu0 %v408
        %v499 = vpop.f32.mrb[0].mxu0
        %v500 = vadd.f32 %v371, %v499
        %v501 = vpop.f32.mrb[0].mxu0
        %502 = vmatprep.mubr.f32.mxu0 0.0
        %503 = vmatmul.mubr.f32.gmra.mrb[0].mxu0 %v411
        %v504 = vpop.f32.mrb[0].mxu0
        %v505 = vadd.f32 %v376, %v504
        %v506 = vpop.f32.mrb[0].mxu0
        %507 = vmatprep.mubr.f32.mxu0 0.0
        %508 = vmatmul.mubr.f32.gmra.mrb[0].mxu0 %v414
        %v509 = vpop.f32.mrb[0].mxu0
        %v510 = vadd.f32 %v381, %v509
        %v511 = vpop.f32.mrb[0].mxu0
        %512 = vmatprep.mubr.f32.mxu0 0.0
        %513 = vmatmul.mubr.f32.gmra.mrb[0].mxu0 %v417
        %v514 = vpop.f32.mrb[0].mxu0
        %v515 = vadd.f32 %v386, %v514
        %v516 = vpop.f32.mrb[0].mxu0
        %517 = vmatprep.mubr.f32.mxu0 0.0
        %518 = vmatmul.mubr.f32.gmra.mrb[0].mxu0 %v420
        %v519 = vpop.f32.mrb[0].mxu0
        %v520 = vadd.f32 %v391, %v519
        %v521 = vpop.f32.mrb[0].mxu0
        %522 = vmatprep.mubr.f32.mxu0 0.0
        %523 = vmatmul.mubr.f32.gmra.mrb[0].mxu0 %v423
        %v524 = vpop.f32.mrb[0].mxu0
        %v525 = vadd.f32 %v396, %v524
        %v526 = vpop.f32.mrb[0].mxu0
        %527 = vmatprep.mubr.f32.mxu0 0.0
        %528 = vmatmul.mubr.f32.gmra.mrb[0].mxu0 %v426
        %v529 = vpop.f32.mrb[0].mxu0
        %v530 = vadd.f32 %v401, %v529
        %v531 = vpop.f32.mrb[0].mxu0
        %532 = vdwg.mxu0
        %v533 = vtanh.pop %v495
        %v534 = vtanh.pop %v500
        %v535 = vtanh.pop %v505
        %v536 = vtanh.pop %v510
        %v537 = vmax.f32 %v515, 0.0
        %v538 = vmax.f32 %v520, 0.0
        %v539 = vmax.f32 %v525, 0.0
        %v540 = vmax.f32 %v530, 0.0
        %v541 = vld [vmem:[%s4] sm:$0xff]
        %v542 = vld [vmem:[%s4 + $0x8] sm:$0xff]
        %v543 = vld [vmem:[%s4 + $0x10] sm:$0xff]
        %v544 = vld [vmem:[%s4 + $0x18] sm:$0xff]
        %v545 = vld [vmem:[%s4 + $0x20] sm:$0xff]
        %v546 = vld [vmem:[%s4 + $0x28] sm:$0xff]
        %v547 = vld [vmem:[%s4 + $0x30] sm:$0xff]
        %v548 = vld [vmem:[%s4 + $0x38] sm:$0xff]
        %v549 = vld [vmem:[%s5] sm:$0xff]
        %v550 = vld [vmem:[%s5 + $0x8] sm:$0xff]
        %v551 = vld [vmem:[%s5 + $0x10] sm:$0xff]
        %v552 = vld [vmem:[%s5 + $0x18] sm:$0xff]
        %v553 = vld [vmem:[%s5 + $0x20] sm:$0xff]
        %v554 = vld [vmem:[%s5 + $0x28] sm:$0xff]
        %v555 = vld [vmem:[%s5 + $0x30] sm:$0xff]
        %v556 = vld [vmem:[%s5 + $0x38] sm:$0xff]
        %558 = vset.pattern.permute.xlu0 0
        %559 = vperm.xlu0 %558, %v549
        %v560 = vpop.permute.xlu0 %559
        %563 = vset.pattern.permute.xlu0 0
        %564 = vperm.xlu0 %563, %v550
        %v565 = vpop.permute.xlu0 %564
        %568 = vset.pattern.permute.xlu0 0
        %569 = vperm.xlu0 %568, %v551
        %v570 = vpop.permute.xlu0 %569
        %573 = vset.pattern.permute.xlu0 0
        %574 = vperm.xlu0 %573, %v552
        %v575 = vpop.permute.xlu0 %574
        %578 = vset.pattern.permute.xlu0 0
        %579 = vperm.xlu0 %578, %v553
        %v580 = vpop.permute.xlu0 %579
        %583 = vset.pattern.permute.xlu0 0
        %584 = vperm.xlu0 %583, %v554
        %v585 = vpop.permute.xlu0 %584
        %588 = vset.pattern.permute.xlu0 0
        %589 = vperm.xlu0 %588, %v555
        %v590 = vpop.permute.xlu0 %589
        %593 = vset.pattern.permute.xlu0 0
        %594 = vperm.xlu0 %593, %v556
        %v595 = vpop.permute.xlu0 %594
        %vm597 = vcmask 523264
        %v599 = vsel %vm597, %v541, 0
        %v602 = vsel %vm597, %v542, 0
        %v605 = vsel %vm597, %v543, 0
        %v608 = vsel %vm597, %v544, 0
        %v611 = vsel %vm597, %v545, 0
        %v614 = vsel %vm597, %v546, 0
        %v617 = vsel %vm597, %v547, 0
        %v620 = vsel %vm597, %v548, 0
        %622 = vmatprep.subr.mxu0 0.0
        %623 = vmatpush1.msra.mxu0 %v533
        %624 = vmatprep.subr.mxu0 0.0
        %625 = vmatpush1.msra.mxu0 %v534
        %626 = vmatprep.subr.mxu0 0.0
        %627 = vmatpush1.msra.mxu0 %v535
        %628 = vmatprep.subr.mxu0 0.0
        %629 = vmatpush1.msra.mxu0 %v536
        %630 = vmatprep.subr.mxu0 0.0
        %631 = vmatpush1.msra.mxu0 %v537
        %632 = vmatprep.subr.mxu0 0.0
        %633 = vmatpush1.msra.mxu0 %v538
        %634 = vmatprep.subr.mxu0 0.0
        %635 = vmatpush1.msra.mxu0 %v539
        %636 = vmatprep.subr.mxu0 0.0
        %637 = vmatpush1.msra.mxu0 %v540
        %638 = vmatprep.subr.mxu0 0.0
        %639 = vmatpush1.msra.mxu0 0.0
        %640 = vmatprep.subr.mxu0 0.0
        %641 = vmatpush1.msra.mxu0 0.0
        %642 = vmatprep.subr.mxu0 0.0
        %643 = vmatpush1.msra.mxu0 0.0
        %644 = vmatprep.subr.mxu0 0.0
        %645 = vmatpush1.msra.mxu0 0.0
        %646 = vmatprep.subr.mxu0 0.0
        %647 = vmatpush1.msra.mxu0 0.0
        %648 = vmatprep.subr.mxu0 0.0
        %649 = vmatpush1.msra.mxu0 0.0
        %650 = vmatprep.subr.mxu0 0.0
        %651 = vmatpush1.msra.mxu0 0.0
        %652 = vmatprep.subr.mxu0 0.0
        %653 = vmatpush1.msra.mxu0 0.0
        %654 = vmatprep.subr.mxu0 0.0
        %655 = vmatpush1.msra.mxu0 0.0
        %656 = vmatprep.subr.mxu0 0.0
        %657 = vmatpush1.msra.mxu0 0.0
        %658 = vmatprep.subr.mxu0 0.0
        %659 = vmatpush1.msra.mxu0 0.0
        %660 = vmatprep.subr.mxu0 0.0
        %661 = vmatpush1.msra.mxu0 0.0
        %662 = vmatprep.subr.mxu0 0.0
        %663 = vmatpush1.msra.mxu0 0.0
        %664 = vmatprep.subr.mxu0 0.0
        %665 = vmatpush1.msra.mxu0 0.0
        %666 = vmatprep.subr.mxu0 0.0
        %667 = vmatpush1.msra.mxu0 0.0
        %668 = vmatprep.subr.mxu0 0.0
        %669 = vmatpush1.msra.mxu0 0.0
        %670 = vmatprep.subr.mxu0 0.0
        %671 = vmatpush1.msra.mxu0 0.0
        %672 = vmatprep.subr.mxu0 0.0
        %673 = vmatpush1.msra.mxu0 0.0
        %674 = vmatprep.subr.mxu0 0.0
        %675 = vmatpush1.msra.mxu0 0.0
        %676 = vmatprep.subr.mxu0 0.0
        %677 = vmatpush1.msra.mxu0 0.0
        %678 = vmatprep.subr.mxu0 0.0
        %679 = vmatpush1.msra.mxu0 0.0
        %680 = vmatprep.subr.mxu0 0.0
        %681 = vmatpush1.msra.mxu0 0.0
        %682 = vmatprep.subr.mxu0 0.0
        %683 = vmatpush1.msra.mxu0 0.0
        %684 = vmatprep.subr.mxu0 0.0
        %685 = vmatpush1.msra.mxu0 0.0
        %686 = vmatprep.mubr.f32.mxu0 0.0
        %687 = vmatmul.mubr.f32.gmra.mrb[0].mxu0 %v599
        %v688 = vpop.f32.mrb[0].mxu0
        %v689 = vadd.f32 %v560, %v688
        %v690 = vpop.f32.mrb[0].mxu0
        %691 = vmatprep.mubr.f32.mxu0 0.0
        %692 = vmatmul.mubr.f32.gmra.mrb[0].mxu0 %v602
        %v693 = vpop.f32.mrb[0].mxu0
        %v694 = vadd.f32 %v565, %v693
        %v695 = vpop.f32.mrb[0].mxu0
        %696 = vmatprep.mubr.f32.mxu0 0.0
        %697 = vmatmul.mubr.f32.gmra.mrb[0].mxu0 %v605
        %v698 = vpop.f32.mrb[0].mxu0
        %v699 = vadd.f32 %v570, %v698
        %v700 = vpop.f32.mrb[0].mxu0
        %701 = vmatprep.mubr.f32.mxu0 0.0
        %702 = vmatmul.mubr.f32.gmra.mrb[0].mxu0 %v608
        %v703 = vpop.f32.mrb[0].mxu0
        %v704 = vadd.f32 %v575, %v703
        %v705 = vpop.f32.mrb[0].mxu0
        %706 = vmatprep.mubr.f32.mxu0 0.0
        %707 = vmatmul.mubr.f32.gmra.mrb[0].mxu0 %v611
        %v708 = vpop.f32.mrb[0].mxu0
        %v709 = vadd.f32 %v580, %v708
        %v710 = vpop.f32.mrb[0].mxu0
        %711 = vmatprep.mubr.f32.mxu0 0.0
        %712 = vmatmul.mubr.f32.gmra.mrb[0].mxu0 %v614
        %v713 = vpop.f32.mrb[0].mxu0
        %v714 = vadd.f32 %v585, %v713
        %v715 = vpop.f32.mrb[0].mxu0
        %716 = vmatprep.mubr.f32.mxu0 0.0
        %717 = vmatmul.mubr.f32.gmra.mrb[0].mxu0 %v617
        %v718 = vpop.f32.mrb[0].mxu0
        %v719 = vadd.f32 %v590, %v718
        %v720 = vpop.f32.mrb[0].mxu0
        %721 = vmatprep.mubr.f32.mxu0 0.0
        %722 = vmatmul.mubr.f32.gmra.mrb[0].mxu0 %v620
        %v723 = vpop.f32.mrb[0].mxu0
        %v724 = vadd.f32 %v595, %v723
        %v725 = vpop.f32.mrb[0].mxu0
        %726 = vdwg.mxu0
        %v727 = vtanh.pop %v689
        %v728 = vtanh.pop %v694
        %v729 = vtanh.pop %v699
        %v730 = vtanh.pop %v704
        %v731 = vmax.f32 %v709, 0.0
        %v732 = vmax.f32 %v714, 0.0
        %v733 = vmax.f32 %v719, 0.0
        %v734 = vmax.f32 %v724, 0.0
        %v735 = vld [vmem:[%s6] sm:$0xff]
        %v736 = vld [vmem:[%s6 + $0x8] sm:$0xff]
        %v737 = vld [vmem:[%s7] sm:$0xff]
        %v738 = vld [vmem:[%s7 + $0x8] sm:$0xff]
        %740 = vset.pattern.permute.xlu0 0
        %741 = vperm.xlu0 %740, %v737
        %v742 = vpop.permute.xlu0 %741
        %745 = vset.pattern.permute.xlu0 0
        %746 = vperm.xlu0 %745, %v738
        %v747 = vpop.permute.xlu0 %746
        %v750 = vsel %vm597, %v735, 0
        %v753 = vsel %vm597, %v736, 0
        %755 = vmatprep.subr.mxu0 0.0
        %756 = vmatpush1.msra.mxu0 %v727
        %757 = vmatprep.subr.mxu0 0.0
        %758 = vmatpush1.msra.mxu0 %v728
        %759 = vmatprep.subr.mxu0 0.0
        %760 = vmatpush1.msra.mxu0 %v729
        %761 = vmatprep.subr.mxu0 0.0
        %762 = vmatpush1.msra.mxu0 %v730
        %763 = vmatprep.subr.mxu0 0.0
        %764 = vmatpush1.msra.mxu0 %v731
        %765 = vmatprep.subr.mxu0 0.0
        %766 = vmatpush1.msra.mxu0 %v732
        %767 = vmatprep.subr.mxu0 0.0
        %768 = vmatpush1.msra.mxu0 %v733
        %769 = vmatprep.subr.mxu0 0.0
        %770 = vmatpush1.msra.mxu0 %v734
        %771 = vmatprep.subr.mxu0 0.0
        %772 = vmatpush1.msra.mxu0 0.0
        %773 = vmatprep.subr.mxu0 0.0
        %774 = vmatpush1.msra.mxu0 0.0
        %775 = vmatprep.subr.mxu0 0.0
        %776 = vmatpush1.msra.mxu0 0.0
        %777 = vmatprep.subr.mxu0 0.0
        %778 = vmatpush1.msra.mxu0 0.0
        %779 = vmatprep.subr.mxu0 0.0
        %780 = vmatpush1.msra.mxu0 0.0
        %781 = vmatprep.subr.mxu0 0.0
        %782 = vmatpush1.msra.mxu0 0.0
        %783 = vmatprep.subr.mxu0 0.0
        %784 = vmatpush1.msra.mxu0 0.0
        %785 = vmatprep.subr.mxu0 0.0
        %786 = vmatpush1.msra.mxu0 0.0
        %787 = vmatprep.subr.mxu0 0.0
        %788 = vmatpush1.msra.mxu0 0.0
        %789 = vmatprep.subr.mxu0 0.0
        %790 = vmatpush1.msra.mxu0 0.0
        %791 = vmatprep.subr.mxu0 0.0
        %792 = vmatpush1.msra.mxu0 0.0
        %793 = vmatprep.subr.mxu0 0.0
        %794 = vmatpush1.msra.mxu0 0.0
        %795 = vmatprep.subr.mxu0 0.0
        %796 = vmatpush1.msra.mxu0 0.0
        %797 = vmatprep.subr.mxu0 0.0
        %798 = vmatpush1.msra.mxu0 0.0
        %799 = vmatprep.subr.mxu0 0.0
        %800 = vmatpush1.msra.mxu0 0.0
        %801 = vmatprep.subr.mxu0 0.0
        %802 = vmatpush1.msra.mxu0 0.0
        %803 = vmatprep.subr.mxu0 0.0
        %804 = vmatpush1.msra.mxu0 0.0
        %805 = vmatprep.subr.mxu0 0.0
        %806 = vmatpush1.msra.mxu0 0.0
        %807 = vmatprep.subr.mxu0 0.0
        %808 = vmatpush1.msra.mxu0 0.0
        %809 = vmatprep.subr.mxu0 0.0
        %810 = vmatpush1.msra.mxu0 0.0
        %811 = vmatprep.subr.mxu0 0.0
        %812 = vmatpush1.msra.mxu0 0.0
        %813 = vmatprep.subr.mxu0 0.0
        %814 = vmatpush1.msra.mxu0 0.0
        %815 = vmatprep.subr.mxu0 0.0
        %816 = vmatpush1.msra.mxu0 0.0
        %817 = vmatprep.subr.mxu0 0.0
        %818 = vmatpush1.msra.mxu0 0.0
        %819 = vmatprep.mubr.f32.mxu0 0.0
        %820 = vmatmul.mubr.f32.gmra.mrb[0].mxu0 %v750
        %v821 = vpop.f32.mrb[0].mxu0
        %v822 = vadd.f32 %v742, %v821
        %v823 = vpop.f32.mrb[0].mxu0
        %824 = vmatprep.mubr.f32.mxu0 0.0
        %825 = vmatmul.mubr.f32.gmra.mrb[0].mxu0 %v753
        %v826 = vpop.f32.mrb[0].mxu0
        %v827 = vadd.f32 %v747, %v826
        %v828 = vpop.f32.mrb[0].mxu0
        %829 = vdwg.mxu0
        %v830 = vmul.f32 %v822, 1.442695
        %v831 = vpow.pop %v830
        %833 = vset.pattern.permute.xlu0 0
        %834 = vperm.xlu0 %833, %v340
        %v835 = vpop.permute.xlu0 %834
        %v837 = vmul.f32 %v831, %v835
        %v838 = vadd.f32 %v837, %v344
        %v839 = vmul.f32 %v827, %v835
        %v840 = vmul.f32 %v822, %v835
        %v841 = vrot.slane %v840, 4
        %v842 = vadd.f32 %v840, %v841
        %v843 = vrot.slane %v842, 2
        %v844 = vadd.f32 %v842, %v843
        %v845 = vrot.slane %v844, 1
        %v846 = vadd.f32 %v844, %v845
        %v847 = vmul.f32 %v338, %v838
        %v848 = vadd.f32 %v847, %v839
        %849 = vst [vmem:[%s327] sm:$0xff] %v848
        %v850 = vsub.f32 0.0, %v846
        %851 = vst [vmem:[%s333] sm:$0x1] %v850
        %s852 = sand.u32 %s208, 1
        %s853 = scalar_lea.sflag [#allocation3], %s852
        %s854 = sand.u32 %s208, 1
        %s855 = smul.addr %s854, 8
        %s856 = scalar_lea.vmem [#allocation2], %s855
        %s857 = sand.u32 %s234, 1
        %s858 = scalar_lea.sflag [#allocation5], %s857
        %s859 = sand.u32 %s234, 1
        %s860 = scalar_lea.vmem [#allocation4], %s859
        // Predicated region
        $region53: #{masked_coupling_forward.1} parent=51 // pred_check
          %p861 = pneg %p218
        $region54: #{masked_coupling_forward.1} parent=51 // pred_check_branch
          %863 = sbr.rel (%p861) target = $region56
        $region55: #{masked_coupling_forward.1} parent=51 // pred_region
          %s865 = ssub.s32 128, 128
          %866 = vsyncadd %s853, %s865
          %s867 = smul.addr %s27, 128
          %s868 = scalar_lea.hbm %s8, %s867
          %s870 = sshll.u32 %s856, 4
          %s871 = int_to_ptr.vmem [resolvable:$true] %s870
          %873 = dma.vmem_to_hbm [thread:$0]  %s871, 128, %s868, %s853
        $region56: #{masked_coupling_forward.1} parent=51 // pred_fallthru
          _
        // Predicated region
        $region57: #{masked_coupling_forward.1} parent=51 // pred_check
          %p874 = pneg %p244
        $region58: #{masked_coupling_forward.1} parent=51 // pred_check_branch
          %876 = sbr.rel (%p874) target = $region60
        $region59: #{masked_coupling_forward.1} parent=51 // pred_region
          %s878 = ssub.s32 16, 16
          %879 = vsyncadd %s858, %s878
          %s880 = smul.addr %s27, 16
          %s881 = scalar_lea.hbm %s9, %s880
          %s883 = sshll.u32 %s860, 4
          %s884 = int_to_ptr.vmem [resolvable:$true] %s883
          %886 = dma.vmem_to_hbm [thread:$0]  %s884, 16, %s881, %s858
        $region60: #{masked_coupling_forward.1} parent=51 // pred_fallthru
          _
      $region52: #{masked_coupling_forward.1} parent=5 // pred_fallthru
        _
      %p887 = scmp.le.s32.totalorder 2, %s22
      // Predicated region
      $region61: #{masked_coupling_forward.1} parent=5 // pred_check
        %p888 = pneg %p887
      $region62: #{masked_coupling_forward.1} parent=5 // pred_check_branch
        %890 = sbr.rel (%p888) target = $region64
      $region63: #{masked_coupling_forward.1} parent=5 // pred_region
        %s891 = ssub.s32 %s22, 2
        // Predicated region
        $region65: #{masked_coupling_forward.1} parent=63 // pred_check
          %p892 = pneg %p224
        $region66: #{masked_coupling_forward.1} parent=63 // pred_check_branch
          %894 = sbr.rel (%p892) target = $region68
        $region67: #{masked_coupling_forward.1} parent=63 // pred_region
          %s895 = sand.u32 %s209, 1
          %s896 = scalar_lea.sflag [#allocation3], %s895
          %s897 = sand.u32 %s209, 1
          %s898 = smul.addr %s897, 8
          %s899 = scalar_lea.vmem [#allocation2], %s898
          %900 = dma.done %s896, 128
        $region68: #{masked_coupling_forward.1} parent=63 // pred_fallthru
          _
        // Predicated region
        $region69: #{masked_coupling_forward.1} parent=63 // pred_check
          %p901 = pneg %p250
        $region70: #{masked_coupling_forward.1} parent=63 // pred_check_branch
          %903 = sbr.rel (%p901) target = $region72
        $region71: #{masked_coupling_forward.1} parent=63 // pred_region
          %s904 = sand.u32 %s235, 1
          %s905 = scalar_lea.sflag [#allocation5], %s904
          %s906 = sand.u32 %s235, 1
          %s907 = scalar_lea.vmem [#allocation4], %s906
          %908 = dma.done %s905, 16
        $region72: #{masked_coupling_forward.1} parent=63 // pred_fallthru
          _
      $region64: #{masked_coupling_forward.1} parent=5 // pred_fallthru
        _
    $region6: #{masked_coupling_forward.1} parent=1 // loop_footer
      %s26 = sadd.s32 1, %s22
    $region7: #{masked_coupling_forward.1} parent=1 // loop_footer_branch
      %21 = sbr.rel target = $region3
    $region8: #{masked_coupling_forward.1} parent=1 // loop_exit
      _
    %909 = vsyncpa [#allocation3], 1
    %s910 = scalar_lea.sflag [#allocation3], 1
    %911 = vsyncpa %s910, 1
    %912 = vsyncpa [#allocation5], 1
    %s913 = scalar_lea.sflag [#allocation5], 1
    %914 = vsyncpa %s913, 1

</llo_original>
